<compile_context>
chip_gen: v7x
topology: tpu7x:2x2x1
jax: 0.10.0
libtpu: 0.0.40
codegen_flags: <defaults>
</compile_context>

<pallas_src>
import jax
import jax.numpy as jnp
from jax.experimental import pallas as pl
from jax.experimental.pallas import tpu as pltpu


def _vmem_capacity_bytes():
    """Per-core VMEM capacity; conservative 64 MiB (v7x) fallback if unknown."""
    try:
        info = pltpu.get_tpu_info()
        for name in ("vmem_capacity_bytes", "vmem_size_bytes", "vmem_bytes"):
            cap = getattr(info, name, None)
            if cap:
                return int(cap)
    except Exception:
        pass
    return 64 << 20


def _choose_tiling(B, S, D, in_itemsize, vmem_budget):
    """Pick tile rows (multiple of 8) and grid length from the per-gen VMEM budget."""
    # Per-block input byte target: big enough to amortize the ~0.35us/step grid
    # overhead, small enough that 2x double-buffered I/O + per-op f32 intermediates
    # fit comfortably inside `vmem_budget`.
    block_bytes = max(1 << 20, min(16 << 20, vmem_budget // 7))

    padded_b8 = pl.cdiv(B, 8) * 8
    n8 = padded_b8 // 8                      # batch rows, in groups of 8
    group_bytes = 8 * S * D * in_itemsize
    tb_groups = max(1, block_bytes // group_bytes)
    if n8 >= 4:
        # keep >= 4 grid steps (>= 2 per v7x TensorCore) so each core still pipelines
        tb_groups = min(tb_groups, max(1, n8 // 4))
    tb_groups = min(tb_groups, n8)

    num_blocks = pl.cdiv(n8, tb_groups)
    if num_blocks > 1 and num_blocks % 2 == 1:
        # prefer an even step count so the v7x megacore split gives both TCs equal work
        alt_groups = pl.cdiv(n8, num_blocks + 1)
        alt_blocks = pl.cdiv(n8, alt_groups)
        if alt_blocks % 2 == 0:
            tb_groups, num_blocks = alt_groups, alt_blocks

    return tb_groups * 8, num_blocks


def _attention_kernel(x_ref, w_ref, o_ref):
    # x_ref: (TB, S, D) block of att_feats, in the input dtype (f32 or bf16)
    # w_ref: (1, 1, D) lane-dense alpha_net weight, pre-cast to the input dtype
    # o_ref: (TB, D) output block

    # --- scores: alpha_net(tanh(x)) as VPU multiply + lane reduce -----------------
    # tanh and the *w multiply stream in the input dtype (bf16 on v6e/v7x halves EUP
    # work); the D-reduction accumulates in f32.  Bias omitted: cancels in softmax.
    tw = jnp.tanh(x_ref[...]) * w_ref[...]                              # (TB, S, D)
    scores = jnp.sum(tw.astype(jnp.float32), axis=-1, keepdims=True)   # (TB, S, 1) f32

    # --- softmax over the att_size axis (axis=1), in f32 --------------------------
    m = jnp.max(scores, axis=1, keepdims=True)                          # (TB, 1, 1)
    e = jnp.exp(scores - m)                                             # (TB, S, 1)
    denom = jnp.sum(e, axis=1, keepdims=True)                           # (TB, 1, 1)
    weight = e / denom                                                  # exact: denom tiny

    # --- bmm(weight.unsqueeze(1), att_feats_) == sum_s weight[:,s] * x[:,s,:] -----
    # weight is f32, so the multiply promotes the streamed x read to f32.
    att_res = jnp.sum(weight * x_ref[...], axis=1)                      # (TB, D) f32
    o_ref[...] = att_res.astype(o_ref.dtype)


def attention_forward(att_feats, w, b=None, *, tb=None):
    """att_feats: (B, ..., D) -> viewed as (B, att_size, D); w: (1, D) torch-style
    Linear(D, 1) weight; b ignored (cancels in softmax). Returns (B, D)."""
    att_feats = jnp.asarray(att_feats)
    B = att_feats.shape[0]
    D = att_feats.shape[-1]
    x = att_feats.reshape(B, -1, D)          # == att_feats.view(-1, att_size, D)
    S = x.shape[1]
    in_itemsize = jnp.dtype(x.dtype).itemsize

    vmem_budget = int(min(_vmem_capacity_bytes() * 3 // 4, 96 << 20))
    if tb is None:
        tb, num_blocks = _choose_tiling(B, S, D, in_itemsize, vmem_budget)
    else:
        tb = max(8, (tb // 8) * 8)
        num_blocks = pl.cdiv(B, tb)

    padded_B = num_blocks * tb
    if padded_B != B:
        # zero rows are harmless: scores=0 -> uniform softmax over zero feats -> 0
        x = jnp.pad(x, ((0, padded_B - B), (0, 0), (0, 0)))

    # lane-dense weight, pre-cast so there is no per-step in-kernel cast
    w3 = jnp.asarray(w).reshape(1, 1, D).astype(x.dtype)

    out = pl.pallas_call(
        _attention_kernel,
        out_shape=jax.ShapeDtypeStruct((padded_B, D), x.dtype),
        grid_spec=pltpu.PrefetchScalarGridSpec(
            num_scalar_prefetch=0,
            grid=(num_blocks,),
            in_specs=[
                pl.BlockSpec((tb, S, D), lambda i: (i, 0, 0)),
                pl.BlockSpec((1, 1, D), lambda i: (0, 0, 0)),
            ],
            out_specs=pl.BlockSpec((tb, D), lambda i: (i, 0)),
        ),
        compiler_params=pltpu.CompilerParams(
            dimension_semantics=("parallel",),
            vmem_limit_bytes=vmem_budget,
        ),
    )(x, w3)
    return out[:B]


def _reference(att_feats, w, b):
    # Pure-JAX reference mirroring the PyTorch forward (att_masks=None), incl. bias.
    B = att_feats.shape[0]
    D = att_feats.shape[-1]
    x = jnp.asarray(att_feats, dtype=jnp.float32).reshape(B, -1, D)
    S = x.shape[1]
    dot = jnp.tanh(x).reshape(-1, D) @ w.reshape(D, 1) + b[0]           # (B*S, 1)
    dot = dot.reshape(B, S)
    weight = jax.nn.softmax(dot, axis=1)                                # (B, S)
    return jnp.einsum("bs,bsd->bd", weight, x)                          # (B, D)


if __name__ == "__main__":
    key = jax.random.PRNGKey(0)
    k1, k2, k3 = jax.random.split(key, 3)

    B, S, D = 2, 8, 512  # D must be 512 (att_hid_size of the module)
    att_feats = jax.random.normal(k1, (B, S, D), dtype=jnp.float32)

    # nn.Linear(512, 1) parameters: weight (1, 512), bias (1,)
    bound = 1.0 / (D ** 0.5)
    w = jax.random.uniform(k2, (1, D), minval=-bound, maxval=bound, dtype=jnp.float32)
    b = jax.random.uniform(k3, (1,), minval=-bound, maxval=bound, dtype=jnp.float32)

    # f32 path: exact-divide softmax -> tight tolerance against the JAX reference
    out = jax.block_until_ready(attention_forward(att_feats, w, b))
    ref = _reference(att_feats, w, b)
    assert out.shape == (B, D)
    assert jnp.allclose(out, ref, atol=1e-4, rtol=1e-4), "f32 mismatch vs JAX reference"

    # bf16 path: halves HBM traffic; tanh/score-multiply run in bf16, accum in f32
    att_bf16 = att_feats.astype(jnp.bfloat16)
    out_bf16 = jax.block_until_ready(
        attention_forward(att_bf16, w.astype(jnp.bfloat16), b))
    ref_bf16 = _reference(att_bf16, w, b)
    assert out_bf16.shape == (B, D)
    assert jnp.allclose(out_bf16.astype(jnp.float32), ref_bf16, atol=5e-2, rtol=5e-2), \
        "bf16 mismatch vs JAX reference"

    print("KERNEL_OK")
</pallas_src>

<mosaic_0001>
module attributes {stable_mosaic.version = 11 : i64} {
  func.func @_attention_kernel(%arg0: i32, %arg1: memref<8x8x512xf32, #tpu.memory_space<vmem>>, %arg2: memref<1x1x512xf32, #tpu.memory_space<vmem>>, %arg3: memref<8x512xf32, #tpu.memory_space<vmem>>) attributes {dimension_semantics = [#tpu.dimension_semantics<parallel>], iteration_bounds = array<i64: 1>, scalar_prefetch = 0 : i64, scratch_operands = 0 : i64, tpu.core_type = #tpu.core_type<tc>, window_params = [{transform_indices = @transform_0, window_bounds = array<i64: 8, 8, 512>}, {pipeline_mode = #tpu.pipeline_mode<synchronous>, transform_indices = @transform_1, window_bounds = array<i64: 1, 1, 512>}, {transform_indices = @transform_2, window_bounds = array<i64: 8, 512>}]} {
    %c0 = arith.constant 0 : index
    %c0_0 = arith.constant 0 : index
    %c0_1 = arith.constant 0 : index
    %0 = vector.load %arg1[%c0, %c0_0, %c0_1] : memref<8x8x512xf32, #tpu.memory_space<vmem>>, vector<8x8x512xf32>
    %1 = math.tanh %0 : vector<8x8x512xf32>
    %c0_2 = arith.constant 0 : index
    %c0_3 = arith.constant 0 : index
    %c0_4 = arith.constant 0 : index
    %2 = vector.load %arg2[%c0_2, %c0_3, %c0_4] : memref<1x1x512xf32, #tpu.memory_space<vmem>>, vector<1x1x512xf32>
    %3 = vector.broadcast %2 : vector<1x1x512xf32> to vector<8x8x512xf32>
    %4 = arith.mulf %1, %3 : vector<8x8x512xf32>
    %cst = arith.constant dense<0.000000e+00> : vector<8x8xf32>
    %5 = vector.multi_reduction <add>, %4, %cst [2] : vector<8x8x512xf32> to vector<8x8xf32>
    %6 = vector.shape_cast %5 : vector<8x8xf32> to vector<8x8x1xf32>
    %cst_5 = arith.constant dense<0xFF800000> : vector<8x1xf32>
    %7 = vector.multi_reduction <maximumf>, %6, %cst_5 [1] : vector<8x8x1xf32> to vector<8x1xf32>
    %8 = vector.shape_cast %7 : vector<8x1xf32> to vector<8x1x1xf32>
    %9 = vector.broadcast %8 : vector<8x1x1xf32> to vector<8x8x1xf32>
    %10 = arith.subf %6, %9 : vector<8x8x1xf32>
    %11 = math.exp %10 : vector<8x8x1xf32>
    %cst_6 = arith.constant dense<0.000000e+00> : vector<8x1xf32>
    %12 = vector.multi_reduction <add>, %11, %cst_6 [1] : vector<8x8x1xf32> to vector<8x1xf32>
    %13 = vector.shape_cast %12 : vector<8x1xf32> to vector<8x1x1xf32>
    %14 = vector.broadcast %13 : vector<8x1x1xf32> to vector<8x8x1xf32>
    %15 = arith.divf %11, %14 : vector<8x8x1xf32>
    %c0_7 = arith.constant 0 : index
    %c0_8 = arith.constant 0 : index
    %c0_9 = arith.constant 0 : index
    %16 = vector.load %arg1[%c0_7, %c0_8, %c0_9] : memref<8x8x512xf32, #tpu.memory_space<vmem>>, vector<8x8x512xf32>
    %17 = vector.broadcast %15 : vector<8x8x1xf32> to vector<8x8x512xf32>
    %18 = arith.mulf %17, %16 : vector<8x8x512xf32>
    %cst_10 = arith.constant dense<0.000000e+00> : vector<8x512xf32>
    %19 = vector.multi_reduction <add>, %18, %cst_10 [1] : vector<8x8x512xf32> to vector<8x512xf32>
    %c0_11 = arith.constant 0 : index
    %c0_12 = arith.constant 0 : index
    %20 = vector.load %arg3[%c0_11, %c0_12] : memref<8x512xf32, #tpu.memory_space<vmem>>, vector<8x512xf32>
    tpu.vector_store %arg3[%c0_11, %c0_12], %19 {strides = array<i32>} : memref<8x512xf32, #tpu.memory_space<vmem>>, vector<8x512xf32>,
    return
  }
  func.func @transform_0(%arg0: i32) -> (i32, i32, i32) {
    %c0_i32 = arith.constant 0 : i32
    %c0_i32_0 = arith.constant 0 : i32
    %c0_i32_1 = arith.constant 0 : i32
    return %arg0, %c0_i32, %c0_i32_0 : i32, i32, i32
  }
  func.func @transform_1(%arg0: i32) -> (i32, i32, i32) {
    %c0_i32 = arith.constant 0 : i32
    %c0_i32_0 = arith.constant 0 : i32
    %c0_i32_1 = arith.constant 0 : i32
    %c0_i32_2 = arith.constant 0 : i32
    return %c0_i32, %c0_i32_0, %c0_i32_1 : i32, i32, i32
  }
  func.func @transform_2(%arg0: i32) -> (i32, i32) {
    %c0_i32 = arith.constant 0 : i32
    %c0_i32_0 = arith.constant 0 : i32
    return %arg0, %c0_i32 : i32, i32
  }
}

</mosaic_0001>

<llo_original>
// kernel: tpu_custom_call.1
$region0: #{tpu_custom_call.1}
  #allocation0 [shape = 'u32[]', space=smem, size = 0x4, offset = 0x4, fixed_abs, tag = 'smem constant byte address 0x4 - core index']
  #allocation1 [shape = 'u32[144,128]{1,0:T(1,128)}', space=vmem, size = 0x12000, scoped, tag = 'internal scratch']
  %s0 = inlined_call_operand.hbm [shape: f32[8,8,512], index: 0, kind: input, shape index: {}]
  %s1 = inlined_call_operand.hbm [shape: f32[1,1,512], index: 1, kind: input, shape index: {}]
  %s2 = inlined_call_operand.hbm [shape: f32[8,512], index: 2, kind: output, shape index: {}]
  %s3 = sld [smem:[#allocation0]]
  $region26: #{tpu_custom_call.1} parent=0
    _
  %s5 = ssub.s32 1, %s3
  %s6 = scalar_select 0, %s5, %s3
  $region1: #{tpu_custom_call.1} parent=0
    #allocation2 [shape = 'u8[131072]{0}', space=vmem, size = 0x20000, scoped, tag = 'input window, operand 0, single buffered']
    #allocation3 [shape = 's32[1]{0}', space=sflag, size = 0x4, scoped, tag = 'scoped memory for tpu_custom_call.1']
    #allocation4 [shape = 's32[1]{0}', space=sflag, size = 0x4, scoped, tag = 'scoped memory for tpu_custom_call.1']
    #allocation5 [shape = 'u8[2048]{0}', space=vmem, size = 0x800, scoped, tag = 'input window, operand 1, single buffered']
    #allocation6 [shape = 's32[1]{0}', space=sflag, size = 0x4, scoped, tag = 'scoped memory for tpu_custom_call.1']
    #allocation7 [shape = 'u8[16384]{0}', space=vmem, size = 0x4000, scoped, tag = 'output window, operand 0, single buffered']
    %7 = vsyncpa [#allocation3], 0
    %8 = vsyncpa [#allocation6], 0
    %9 = vsyncpa [#allocation4], 0
    // Predicated region
    $region2: #{tpu_custom_call.1} parent=1 // pred_check
      _
    $region3: #{tpu_custom_call.1} parent=1 // pred_check_branch
      %11 = sbr.rel (0) target = $region5
    $region4: #{tpu_custom_call.1} parent=1 // pred_region
      %s13 = ssub.s32 4096, 4096
      %14 = vsyncadd [#allocation3], %s13
      %s15 = sshll.u32 [#allocation2], 4
      %s16 = int_to_ptr.vmem [resolvable:$true] %s15
      %21 = dma.hbm_to_vmem [thread:$0]  %s0, 4096, %s16, [#allocation3], 512, 512, 32
    $region5: #{tpu_custom_call.1} parent=1 // pred_fallthru
      _
    // Predicated region
    $region6: #{tpu_custom_call.1} parent=1 // pred_check
      _
    $region7: #{tpu_custom_call.1} parent=1 // pred_check_branch
      %23 = sbr.rel (0) target = $region9
    $region8: #{tpu_custom_call.1} parent=1 // pred_region
      %s25 = ssub.s32 64, 64
      %26 = vsyncadd [#allocation6], %s25
      %s28 = sshll.u32 [#allocation5], 4
      %s29 = int_to_ptr.vmem [resolvable:$true] %s28
      %31 = dma.hbm_to_vmem [thread:$0]  %s1, 64, %s29, [#allocation6]
    $region9: #{tpu_custom_call.1} parent=1 // pred_fallthru
      _
    // Predicated region
    $region10: #{tpu_custom_call.1} parent=1 // pred_check
      _
    $region11: #{tpu_custom_call.1} parent=1 // pred_check_branch
      %33 = sbr.rel (0) target = $region13
    $region12: #{tpu_custom_call.1} parent=1 // pred_region
      %34 = dma.done [#allocation3], 4096
    $region13: #{tpu_custom_call.1} parent=1 // pred_fallthru
      _
    // Predicated region
    $region14: #{tpu_custom_call.1} parent=1 // pred_check
      _
    $region15: #{tpu_custom_call.1} parent=1 // pred_check_branch
      %36 = sbr.rel (0) target = $region17
    $region16: #{tpu_custom_call.1} parent=1 // pred_region
      %37 = dma.done [#allocation6], 64
    $region17: #{tpu_custom_call.1} parent=1 // pred_fallthru
      _
    %v38 = vld [vmem:[#allocation2] sm:$0xff]
    %v39 = vld [vmem:[#allocation2 + $0x8] sm:$0xff]
    %v40 = vld [vmem:[#allocation2 + $0x10] sm:$0xff]
    %v41 = vld [vmem:[#allocation2 + $0x18] sm:$0xff]
    %v42 = vld [vmem:[#allocation2 + $0x20] sm:$0xff]
    %v43 = vld [vmem:[#allocation2 + $0x28] sm:$0xff]
    %v44 = vld [vmem:[#allocation2 + $0x30] sm:$0xff]
    %v45 = vld [vmem:[#allocation2 + $0x38] sm:$0xff]
    %v46 = vld [vmem:[#allocation2 + $0x40] sm:$0xff]
    %v47 = vld [vmem:[#allocation2 + $0x48] sm:$0xff]
    %v48 = vld [vmem:[#allocation2 + $0x50] sm:$0xff]
    %v49 = vld [vmem:[#allocation2 + $0x58] sm:$0xff]
    %v50 = vld [vmem:[#allocation2 + $0x60] sm:$0xff]
    %v51 = vld [vmem:[#allocation2 + $0x68] sm:$0xff]
    %v52 = vld [vmem:[#allocation2 + $0x70] sm:$0xff]
    %v53 = vld [vmem:[#allocation2 + $0x78] sm:$0xff]
    %v54 = vld [vmem:[#allocation2 + $0x80] sm:$0xff]
    %v55 = vld [vmem:[#allocation2 + $0x88] sm:$0xff]
    %v56 = vld [vmem:[#allocation2 + $0x90] sm:$0xff]
    %v57 = vld [vmem:[#allocation2 + $0x98] sm:$0xff]
    %v58 = vld [vmem:[#allocation2 + $0xa0] sm:$0xff]
    %v59 = vld [vmem:[#allocation2 + $0xa8] sm:$0xff]
    %v60 = vld [vmem:[#allocation2 + $0xb0] sm:$0xff]
    %v61 = vld [vmem:[#allocation2 + $0xb8] sm:$0xff]
    %v62 = vld [vmem:[#allocation2 + $0xc0] sm:$0xff]
    %v63 = vld [vmem:[#allocation2 + $0xc8] sm:$0xff]
    %v64 = vld [vmem:[#allocation2 + $0xd0] sm:$0xff]
    %v65 = vld [vmem:[#allocation2 + $0xd8] sm:$0xff]
    %v66 = vld [vmem:[#allocation2 + $0xe0] sm:$0xff]
    %v67 = vld [vmem:[#allocation2 + $0xe8] sm:$0xff]
    %v68 = vld [vmem:[#allocation2 + $0xf0] sm:$0xff]
    %v69 = vld [vmem:[#allocation2 + $0xf8] sm:$0xff]
    %v70 = vtanh.pop %v38
    %v71 = vtanh.pop %v39
    %v72 = vtanh.pop %v40
    %v73 = vtanh.pop %v41
    %v74 = vtanh.pop %v42
    %v75 = vtanh.pop %v43
    %v76 = vtanh.pop %v44
    %v77 = vtanh.pop %v45
    %v78 = vtanh.pop %v46
    %v79 = vtanh.pop %v47
    %v80 = vtanh.pop %v48
    %v81 = vtanh.pop %v49
    %v82 = vtanh.pop %v50
    %v83 = vtanh.pop %v51
    %v84 = vtanh.pop %v52
    %v85 = vtanh.pop %v53
    %v86 = vtanh.pop %v54
    %v87 = vtanh.pop %v55
    %v88 = vtanh.pop %v56
    %v89 = vtanh.pop %v57
    %v90 = vtanh.pop %v58
    %v91 = vtanh.pop %v59
    %v92 = vtanh.pop %v60
    %v93 = vtanh.pop %v61
    %v94 = vtanh.pop %v62
    %v95 = vtanh.pop %v63
    %v96 = vtanh.pop %v64
    %v97 = vtanh.pop %v65
    %v98 = vtanh.pop %v66
    %v99 = vtanh.pop %v67
    %v100 = vtanh.pop %v68
    %v101 = vtanh.pop %v69
    %v102 = vld [vmem:[#allocation5] sm:$0xf]
    %v104 = vlaneseq
    %v105 = vshrl.u32 %v104, 7
    %v106 = vsub.s32 0, %v105
    %v107 = vrot.slane %v102, %v106
    %v108 = vlaneseq
    %v109 = vshrl.u32 %v108, 7
    %v110 = vsub.s32 1, %v109
    %v111 = vrot.slane %v102, %v110
    %v112 = vlaneseq
    %v113 = vshrl.u32 %v112, 7
    %v114 = vsub.s32 2, %v113
    %v115 = vrot.slane %v102, %v114
    %v116 = vlaneseq
    %v117 = vshrl.u32 %v116, 7
    %v118 = vsub.s32 3, %v117
    %v119 = vrot.slane %v102, %v118
    %v124 = vmul.f32 %v70, %v107
    %v125 = vmul.f32 %v71, %v111
    %v126 = vmul.f32 %v72, %v115
    %v127 = vmul.f32 %v73, %v119
    %v128 = vmul.f32 %v74, %v107
    %v129 = vmul.f32 %v75, %v111
    %v130 = vmul.f32 %v76, %v115
    %v131 = vmul.f32 %v77, %v119
    %v132 = vmul.f32 %v78, %v107
    %v133 = vmul.f32 %v79, %v111
    %v134 = vmul.f32 %v80, %v115
    %v135 = vmul.f32 %v81, %v119
    %v136 = vmul.f32 %v82, %v107
    %v137 = vmul.f32 %v83, %v111
    %v138 = vmul.f32 %v84, %v115
    %v139 = vmul.f32 %v85, %v119
    %v140 = vmul.f32 %v86, %v107
    %v141 = vmul.f32 %v87, %v111
    %v142 = vmul.f32 %v88, %v115
    %v143 = vmul.f32 %v89, %v119
    %v144 = vmul.f32 %v90, %v107
    %v145 = vmul.f32 %v91, %v111
    %v146 = vmul.f32 %v92, %v115
    %v147 = vmul.f32 %v93, %v119
    %v148 = vmul.f32 %v94, %v107
    %v149 = vmul.f32 %v95, %v111
    %v150 = vmul.f32 %v96, %v115
    %v151 = vmul.f32 %v97, %v119
    %v152 = vmul.f32 %v98, %v107
    %v153 = vmul.f32 %v99, %v111
    %v154 = vmul.f32 %v100, %v115
    %v155 = vmul.f32 %v101, %v119
    %v156 = vadd.f32 %v124, %v125
    %v157 = vadd.f32 %v156, %v126
    %v158 = vadd.f32 %v157, %v127
    %159 = vadd.xlane.f32.xlu0 %v158
    %v160 = vpop.xlane.xlu0 %159
    %v161 = vadd.f32 %v128, %v129
    %v162 = vadd.f32 %v161, %v130
    %v163 = vadd.f32 %v162, %v131
    %164 = vadd.xlane.f32.xlu0 %v163
    %v165 = vpop.xlane.xlu0 %164
    %v166 = vadd.f32 %v132, %v133
    %v167 = vadd.f32 %v166, %v134
    %v168 = vadd.f32 %v167, %v135
    %169 = vadd.xlane.f32.xlu0 %v168
    %v170 = vpop.xlane.xlu0 %169
    %v171 = vadd.f32 %v136, %v137
    %v172 = vadd.f32 %v171, %v138
    %v173 = vadd.f32 %v172, %v139
    %174 = vadd.xlane.f32.xlu0 %v173
    %v175 = vpop.xlane.xlu0 %174
    %v176 = vadd.f32 %v140, %v141
    %v177 = vadd.f32 %v176, %v142
    %v178 = vadd.f32 %v177, %v143
    %179 = vadd.xlane.f32.xlu0 %v178
    %v180 = vpop.xlane.xlu0 %179
    %v181 = vadd.f32 %v144, %v145
    %v182 = vadd.f32 %v181, %v146
    %v183 = vadd.f32 %v182, %v147
    %184 = vadd.xlane.f32.xlu0 %v183
    %v185 = vpop.xlane.xlu0 %184
    %v186 = vadd.f32 %v148, %v149
    %v187 = vadd.f32 %v186, %v150
    %v188 = vadd.f32 %v187, %v151
    %189 = vadd.xlane.f32.xlu0 %v188
    %v190 = vpop.xlane.xlu0 %189
    %v191 = vadd.f32 %v152, %v153
    %v192 = vadd.f32 %v191, %v154
    %v193 = vadd.f32 %v192, %v155
    %194 = vadd.xlane.f32.xlu0 %v193
    %v195 = vpop.xlane.xlu0 %194
    %v196 = vrot.slane %v160, 4
    %v197 = vmax.f32 %v160, %v196
    %v198 = vrot.slane %v197, 2
    %v199 = vmax.f32 %v197, %v198
    %v200 = vrot.slane %v199, 1
    %v201 = vmax.f32 %v199, %v200
    %v202 = vrot.slane %v165, 4
    %v203 = vmax.f32 %v165, %v202
    %v204 = vrot.slane %v203, 2
    %v205 = vmax.f32 %v203, %v204
    %v206 = vrot.slane %v205, 1
    %v207 = vmax.f32 %v205, %v206
    %v208 = vrot.slane %v170, 4
    %v209 = vmax.f32 %v170, %v208
    %v210 = vrot.slane %v209, 2
    %v211 = vmax.f32 %v209, %v210
    %v212 = vrot.slane %v211, 1
    %v213 = vmax.f32 %v211, %v212
    %v214 = vrot.slane %v175, 4
    %v215 = vmax.f32 %v175, %v214
    %v216 = vrot.slane %v215, 2
    %v217 = vmax.f32 %v215, %v216
    %v218 = vrot.slane %v217, 1
    %v219 = vmax.f32 %v217, %v218
    %v220 = vrot.slane %v180, 4
    %v221 = vmax.f32 %v180, %v220
    %v222 = vrot.slane %v221, 2
    %v223 = vmax.f32 %v221, %v222
    %v224 = vrot.slane %v223, 1
    %v225 = vmax.f32 %v223, %v224
    %v226 = vrot.slane %v185, 4
    %v227 = vmax.f32 %v185, %v226
    %v228 = vrot.slane %v227, 2
    %v229 = vmax.f32 %v227, %v228
    %v230 = vrot.slane %v229, 1
    %v231 = vmax.f32 %v229, %v230
    %v232 = vrot.slane %v190, 4
    %v233 = vmax.f32 %v190, %v232
    %v234 = vrot.slane %v233, 2
    %v235 = vmax.f32 %v233, %v234
    %v236 = vrot.slane %v235, 1
    %v237 = vmax.f32 %v235, %v236
    %v238 = vrot.slane %v195, 4
    %v239 = vmax.f32 %v195, %v238
    %v240 = vrot.slane %v239, 2
    %v241 = vmax.f32 %v239, %v240
    %v242 = vrot.slane %v241, 1
    %v243 = vmax.f32 %v241, %v242
    %v244 = vsub.f32 %v160, %v201
    %v245 = vsub.f32 %v165, %v207
    %v246 = vsub.f32 %v170, %v213
    %v247 = vsub.f32 %v175, %v219
    %v248 = vsub.f32 %v180, %v225
    %v249 = vsub.f32 %v185, %v231
    %v250 = vsub.f32 %v190, %v237
    %v251 = vsub.f32 %v195, %v243
    %v252 = vmul.f32 %v244, 1.442695
    %v253 = vpow.pop %v252
    %v254 = vmul.f32 %v245, 1.442695
    %v255 = vpow.pop %v254
    %v256 = vmul.f32 %v246, 1.442695
    %v257 = vpow.pop %v256
    %v258 = vmul.f32 %v247, 1.442695
    %v259 = vpow.pop %v258
    %v260 = vmul.f32 %v248, 1.442695
    %v261 = vpow.pop %v260
    %v262 = vmul.f32 %v249, 1.442695
    %v263 = vpow.pop %v262
    %v264 = vmul.f32 %v250, 1.442695
    %v265 = vpow.pop %v264
    %v266 = vmul.f32 %v251, 1.442695
    %v267 = vpow.pop %v266
    %v268 = vrot.slane %v253, 4
    %v269 = vadd.f32 %v253, %v268
    %v270 = vrot.slane %v269, 2
    %v271 = vadd.f32 %v269, %v270
    %v272 = vrot.slane %v271, 1
    %v273 = vadd.f32 %v271, %v272
    %v274 = vrot.slane %v255, 4
    %v275 = vadd.f32 %v255, %v274
    %v276 = vrot.slane %v275, 2
    %v277 = vadd.f32 %v275, %v276
    %v278 = vrot.slane %v277, 1
    %v279 = vadd.f32 %v277, %v278
    %v280 = vrot.slane %v257, 4
    %v281 = vadd.f32 %v257, %v280
    %v282 = vrot.slane %v281, 2
    %v283 = vadd.f32 %v281, %v282
    %v284 = vrot.slane %v283, 1
    %v285 = vadd.f32 %v283, %v284
    %v286 = vrot.slane %v259, 4
    %v287 = vadd.f32 %v259, %v286
    %v288 = vrot.slane %v287, 2
    %v289 = vadd.f32 %v287, %v288
    %v290 = vrot.slane %v289, 1
    %v291 = vadd.f32 %v289, %v290
    %v292 = vrot.slane %v261, 4
    %v293 = vadd.f32 %v261, %v292
    %v294 = vrot.slane %v293, 2
    %v295 = vadd.f32 %v293, %v294
    %v296 = vrot.slane %v295, 1
    %v297 = vadd.f32 %v295, %v296
    %v298 = vrot.slane %v263, 4
    %v299 = vadd.f32 %v263, %v298
    %v300 = vrot.slane %v299, 2
    %v301 = vadd.f32 %v299, %v300
    %v302 = vrot.slane %v301, 1
    %v303 = vadd.f32 %v301, %v302
    %v304 = vrot.slane %v265, 4
    %v305 = vadd.f32 %v265, %v304
    %v306 = vrot.slane %v305, 2
    %v307 = vadd.f32 %v305, %v306
    %v308 = vrot.slane %v307, 1
    %v309 = vadd.f32 %v307, %v308
    %v310 = vrot.slane %v267, 4
    %v311 = vadd.f32 %v267, %v310
    %v312 = vrot.slane %v311, 2
    %v313 = vadd.f32 %v311, %v312
    %v314 = vrot.slane %v313, 1
    %v315 = vadd.f32 %v313, %v314
    %v316 = vrcp.pop %v273
    %v317 = vmul.f32 %v253, %v316
    %v318 = vrcp.pop %v279
    %v319 = vmul.f32 %v255, %v318
    %v320 = vrcp.pop %v285
    %v321 = vmul.f32 %v257, %v320
    %v322 = vrcp.pop %v291
    %v323 = vmul.f32 %v259, %v322
    %v324 = vrcp.pop %v297
    %v325 = vmul.f32 %v261, %v324
    %v326 = vrcp.pop %v303
    %v327 = vmul.f32 %v263, %v326
    %v328 = vrcp.pop %v309
    %v329 = vmul.f32 %v265, %v328
    %v330 = vrcp.pop %v315
    %v331 = vmul.f32 %v267, %v330
    %v332 = vmul.f32 %v317, %v38
    %v333 = vmul.f32 %v317, %v39
    %v334 = vmul.f32 %v317, %v40
    %v335 = vmul.f32 %v317, %v41
    %v336 = vmul.f32 %v319, %v42
    %v337 = vmul.f32 %v319, %v43
    %v338 = vmul.f32 %v319, %v44
    %v339 = vmul.f32 %v319, %v45
    %v340 = vmul.f32 %v321, %v46
    %v341 = vmul.f32 %v321, %v47
    %v342 = vmul.f32 %v321, %v48
    %v343 = vmul.f32 %v321, %v49
    %v344 = vmul.f32 %v323, %v50
    %v345 = vmul.f32 %v323, %v51
    %v346 = vmul.f32 %v323, %v52
    %v347 = vmul.f32 %v323, %v53
    %v348 = vmul.f32 %v325, %v54
    %v349 = vmul.f32 %v325, %v55
    %v350 = vmul.f32 %v325, %v56
    %v351 = vmul.f32 %v325, %v57
    %v352 = vmul.f32 %v327, %v58
    %v353 = vmul.f32 %v327, %v59
    %v354 = vmul.f32 %v327, %v60
    %v355 = vmul.f32 %v327, %v61
    %v356 = vmul.f32 %v329, %v62
    %v357 = vmul.f32 %v329, %v63
    %v358 = vmul.f32 %v329, %v64
    %v359 = vmul.f32 %v329, %v65
    %v360 = vmul.f32 %v331, %v66
    %v361 = vmul.f32 %v331, %v67
    %v362 = vmul.f32 %v331, %v68
    %v363 = vmul.f32 %v331, %v69
    %v364 = vrot.slane %v332, 4
    %v365 = vadd.f32 %v332, %v364
    %v366 = vrot.slane %v365, 2
    %v367 = vadd.f32 %v365, %v366
    %v368 = vrot.slane %v367, 1
    %v369 = vadd.f32 %v367, %v368
    %v370 = vrot.slane %v333, 4
    %v371 = vadd.f32 %v333, %v370
    %v372 = vrot.slane %v371, 2
    %v373 = vadd.f32 %v371, %v372
    %v374 = vrot.slane %v373, 1
    %v375 = vadd.f32 %v373, %v374
    %v376 = vrot.slane %v334, 4
    %v377 = vadd.f32 %v334, %v376
    %v378 = vrot.slane %v377, 2
    %v379 = vadd.f32 %v377, %v378
    %v380 = vrot.slane %v379, 1
    %v381 = vadd.f32 %v379, %v380
    %v382 = vrot.slane %v335, 4
    %v383 = vadd.f32 %v335, %v382
    %v384 = vrot.slane %v383, 2
    %v385 = vadd.f32 %v383, %v384
    %v386 = vrot.slane %v385, 1
    %v387 = vadd.f32 %v385, %v386
    %v388 = vrot.slane %v336, 4
    %v389 = vadd.f32 %v336, %v388
    %v390 = vrot.slane %v389, 2
    %v391 = vadd.f32 %v389, %v390
    %v392 = vrot.slane %v391, 1
    %v393 = vadd.f32 %v391, %v392
    %v394 = vrot.slane %v337, 4
    %v395 = vadd.f32 %v337, %v394
    %v396 = vrot.slane %v395, 2
    %v397 = vadd.f32 %v395, %v396
    %v398 = vrot.slane %v397, 1
    %v399 = vadd.f32 %v397, %v398
    %v400 = vrot.slane %v338, 4
    %v401 = vadd.f32 %v338, %v400
    %v402 = vrot.slane %v401, 2
    %v403 = vadd.f32 %v401, %v402
    %v404 = vrot.slane %v403, 1
    %v405 = vadd.f32 %v403, %v404
    %v406 = vrot.slane %v339, 4
    %v407 = vadd.f32 %v339, %v406
    %v408 = vrot.slane %v407, 2
    %v409 = vadd.f32 %v407, %v408
    %v410 = vrot.slane %v409, 1
    %v411 = vadd.f32 %v409, %v410
    %v412 = vrot.slane %v340, 4
    %v413 = vadd.f32 %v340, %v412
    %v414 = vrot.slane %v413, 2
    %v415 = vadd.f32 %v413, %v414
    %v416 = vrot.slane %v415, 1
    %v417 = vadd.f32 %v415, %v416
    %v418 = vrot.slane %v341, 4
    %v419 = vadd.f32 %v341, %v418
    %v420 = vrot.slane %v419, 2
    %v421 = vadd.f32 %v419, %v420
    %v422 = vrot.slane %v421, 1
    %v423 = vadd.f32 %v421, %v422
    %v424 = vrot.slane %v342, 4
    %v425 = vadd.f32 %v342, %v424
    %v426 = vrot.slane %v425, 2
    %v427 = vadd.f32 %v425, %v426
    %v428 = vrot.slane %v427, 1
    %v429 = vadd.f32 %v427, %v428
    %v430 = vrot.slane %v343, 4
    %v431 = vadd.f32 %v343, %v430
    %v432 = vrot.slane %v431, 2
    %v433 = vadd.f32 %v431, %v432
    %v434 = vrot.slane %v433, 1
    %v435 = vadd.f32 %v433, %v434
    %v436 = vrot.slane %v344, 4
    %v437 = vadd.f32 %v344, %v436
    %v438 = vrot.slane %v437, 2
    %v439 = vadd.f32 %v437, %v438
    %v440 = vrot.slane %v439, 1
    %v441 = vadd.f32 %v439, %v440
    %v442 = vrot.slane %v345, 4
    %v443 = vadd.f32 %v345, %v442
    %v444 = vrot.slane %v443, 2
    %v445 = vadd.f32 %v443, %v444
    %v446 = vrot.slane %v445, 1
    %v447 = vadd.f32 %v445, %v446
    %v448 = vrot.slane %v346, 4
    %v449 = vadd.f32 %v346, %v448
    %v450 = vrot.slane %v449, 2
    %v451 = vadd.f32 %v449, %v450
    %v452 = vrot.slane %v451, 1
    %v453 = vadd.f32 %v451, %v452
    %v454 = vrot.slane %v347, 4
    %v455 = vadd.f32 %v347, %v454
    %v456 = vrot.slane %v455, 2
    %v457 = vadd.f32 %v455, %v456
    %v458 = vrot.slane %v457, 1
    %v459 = vadd.f32 %v457, %v458
    %v460 = vrot.slane %v348, 4
    %v461 = vadd.f32 %v348, %v460
    %v462 = vrot.slane %v461, 2
    %v463 = vadd.f32 %v461, %v462
    %v464 = vrot.slane %v463, 1
    %v465 = vadd.f32 %v463, %v464
    %v466 = vrot.slane %v349, 4
    %v467 = vadd.f32 %v349, %v466
    %v468 = vrot.slane %v467, 2
    %v469 = vadd.f32 %v467, %v468
    %v470 = vrot.slane %v469, 1
    %v471 = vadd.f32 %v469, %v470
    %v472 = vrot.slane %v350, 4
    %v473 = vadd.f32 %v350, %v472
    %v474 = vrot.slane %v473, 2
    %v475 = vadd.f32 %v473, %v474
    %v476 = vrot.slane %v475, 1
    %v477 = vadd.f32 %v475, %v476
    %v478 = vrot.slane %v351, 4
    %v479 = vadd.f32 %v351, %v478
    %v480 = vrot.slane %v479, 2
    %v481 = vadd.f32 %v479, %v480
    %v482 = vrot.slane %v481, 1
    %v483 = vadd.f32 %v481, %v482
    %v484 = vrot.slane %v352, 4
    %v485 = vadd.f32 %v352, %v484
    %v486 = vrot.slane %v485, 2
    %v487 = vadd.f32 %v485, %v486
    %v488 = vrot.slane %v487, 1
    %v489 = vadd.f32 %v487, %v488
    %v490 = vrot.slane %v353, 4
    %v491 = vadd.f32 %v353, %v490
    %v492 = vrot.slane %v491, 2
    %v493 = vadd.f32 %v491, %v492
    %v494 = vrot.slane %v493, 1
    %v495 = vadd.f32 %v493, %v494
    %v496 = vrot.slane %v354, 4
    %v497 = vadd.f32 %v354, %v496
    %v498 = vrot.slane %v497, 2
    %v499 = vadd.f32 %v497, %v498
    %v500 = vrot.slane %v499, 1
    %v501 = vadd.f32 %v499, %v500
    %v502 = vrot.slane %v355, 4
    %v503 = vadd.f32 %v355, %v502
    %v504 = vrot.slane %v503, 2
    %v505 = vadd.f32 %v503, %v504
    %v506 = vrot.slane %v505, 1
    %v507 = vadd.f32 %v505, %v506
    %v508 = vrot.slane %v356, 4
    %v509 = vadd.f32 %v356, %v508
    %v510 = vrot.slane %v509, 2
    %v511 = vadd.f32 %v509, %v510
    %v512 = vrot.slane %v511, 1
    %v513 = vadd.f32 %v511, %v512
    %v514 = vrot.slane %v357, 4
    %v515 = vadd.f32 %v357, %v514
    %v516 = vrot.slane %v515, 2
    %v517 = vadd.f32 %v515, %v516
    %v518 = vrot.slane %v517, 1
    %v519 = vadd.f32 %v517, %v518
    %v520 = vrot.slane %v358, 4
    %v521 = vadd.f32 %v358, %v520
    %v522 = vrot.slane %v521, 2
    %v523 = vadd.f32 %v521, %v522
    %v524 = vrot.slane %v523, 1
    %v525 = vadd.f32 %v523, %v524
    %v526 = vrot.slane %v359, 4
    %v527 = vadd.f32 %v359, %v526
    %v528 = vrot.slane %v527, 2
    %v529 = vadd.f32 %v527, %v528
    %v530 = vrot.slane %v529, 1
    %v531 = vadd.f32 %v529, %v530
    %v532 = vrot.slane %v360, 4
    %v533 = vadd.f32 %v360, %v532
    %v534 = vrot.slane %v533, 2
    %v535 = vadd.f32 %v533, %v534
    %v536 = vrot.slane %v535, 1
    %v537 = vadd.f32 %v535, %v536
    %v538 = vrot.slane %v361, 4
    %v539 = vadd.f32 %v361, %v538
    %v540 = vrot.slane %v539, 2
    %v541 = vadd.f32 %v539, %v540
    %v542 = vrot.slane %v541, 1
    %v543 = vadd.f32 %v541, %v542
    %v544 = vrot.slane %v362, 4
    %v545 = vadd.f32 %v362, %v544
    %v546 = vrot.slane %v545, 2
    %v547 = vadd.f32 %v545, %v546
    %v548 = vrot.slane %v547, 1
    %v549 = vadd.f32 %v547, %v548
    %v550 = vrot.slane %v363, 4
    %v551 = vadd.f32 %v363, %v550
    %v552 = vrot.slane %v551, 2
    %v553 = vadd.f32 %v551, %v552
    %v554 = vrot.slane %v553, 1
    %v555 = vadd.f32 %v553, %v554
    %vm588 = vcmask 1041409
    %v589 = vsel %vm588, %v393, %v369
    %vm590 = vcmask 1042434
    %v591 = vsel %vm590, %v417, %v589
    %vm592 = vcmask 1043459
    %v593 = vsel %vm592, %v441, %v591
    %vm594 = vcmask 1044484
    %v595 = vsel %vm594, %v465, %v593
    %vm596 = vcmask 1045509
    %v597 = vsel %vm596, %v489, %v595
    %vm598 = vcmask 1046534
    %v599 = vsel %vm598, %v513, %v597
    %vm600 = vcmask 1047559
    %v601 = vsel %vm600, %v537, %v599
    %v602 = vsel %vm588, %v399, %v375
    %v603 = vsel %vm590, %v423, %v602
    %v604 = vsel %vm592, %v447, %v603
    %v605 = vsel %vm594, %v471, %v604
    %v606 = vsel %vm596, %v495, %v605
    %v607 = vsel %vm598, %v519, %v606
    %v608 = vsel %vm600, %v543, %v607
    %v609 = vsel %vm588, %v405, %v381
    %v610 = vsel %vm590, %v429, %v609
    %v611 = vsel %vm592, %v453, %v610
    %v612 = vsel %vm594, %v477, %v611
    %v613 = vsel %vm596, %v501, %v612
    %v614 = vsel %vm598, %v525, %v613
    %v615 = vsel %vm600, %v549, %v614
    %v616 = vsel %vm588, %v411, %v387
    %v617 = vsel %vm590, %v435, %v616
    %v618 = vsel %vm592, %v459, %v617
    %v619 = vsel %vm594, %v483, %v618
    %v620 = vsel %vm596, %v507, %v619
    %v621 = vsel %vm598, %v531, %v620
    %v622 = vsel %vm600, %v555, %v621
    %627 = vst [vmem:[#allocation7] sm:$0xff] %v601
    %628 = vst [vmem:[#allocation7 + $0x8] sm:$0xff] %v608
    %629 = vst [vmem:[#allocation7 + $0x10] sm:$0xff] %v615
    %630 = vst [vmem:[#allocation7 + $0x18] sm:$0xff] %v622
    // Predicated region
    $region18: #{tpu_custom_call.1} parent=1 // pred_check
      _
    $region19: #{tpu_custom_call.1} parent=1 // pred_check_branch
      %632 = sbr.rel (0) target = $region21
    $region20: #{tpu_custom_call.1} parent=1 // pred_region
      %s634 = ssub.s32 512, 512
      %635 = vsyncadd [#allocation4], %s634
      %s637 = sshll.u32 [#allocation7], 4
      %s638 = int_to_ptr.vmem [resolvable:$true] %s637
      %640 = dma.vmem_to_hbm [thread:$0]  %s638, 512, %s2, [#allocation4]
    $region21: #{tpu_custom_call.1} parent=1 // pred_fallthru
      _
    // Predicated region
    $region22: #{tpu_custom_call.1} parent=1 // pred_check
      _
    $region23: #{tpu_custom_call.1} parent=1 // pred_check_branch
      %642 = sbr.rel (0) target = $region25
    $region24: #{tpu_custom_call.1} parent=1 // pred_region
      %643 = dma.done [#allocation4], 512
    $region25: #{tpu_custom_call.1} parent=1 // pred_fallthru
      _
    %644 = vsyncpa [#allocation3], 1
    %645 = vsyncpa [#allocation6], 1
    %646 = vsyncpa [#allocation4], 1

</llo_original>
